<compile_context>
chip_gen: v6e
topology: v6e:2x2x1
jax: 0.10.0
libtpu: 0.0.40
codegen_flags: <defaults>
</compile_context>

<pallas_src>
import jax
import jax.numpy as jnp
from jax import lax
from jax.experimental import pallas as pl
from jax.experimental.pallas import tpu as pltpu


# Canonical contraction: A (m, k) @ B (k, n) — contraction dim is the sublane dim
# of every weight tile (weights are pre-transposed once in the wrapper).
_DN_NT = (((1,), (0,)), ((), ()))


def llama_mlp_kernel(x_ref, wgu_ref, wd_ref, o_ref, acc_ref):
    # x_ref  : (TM, D)      activation tile (resident across the I grid axis)
    # wgu_ref: (D, 2*TI)    fused [gate | up] weight tile (pre-transposed)
    # wd_ref : (TI, D)      down_proj weight tile (pre-transposed)
    # o_ref  : (TM, D)      output tile (resident across the I grid axis)
    # acc_ref: (TM, D)      float32 VMEM accumulator
    i_step = pl.program_id(1)
    ti = wd_ref.shape[0]

    @pl.when(i_step == 0)
    def _():
        acc_ref[...] = jnp.zeros_like(acc_ref)

    x = x_ref[...]
    # One fused matmul per step: (TM, D) @ (D, 2*TI) -> (TM, 2*TI), f32 accumulate.
    gu = lax.dot_general(x, wgu_ref[...], _DN_NT, preferred_element_type=jnp.float32)
    gate = gu[:, :ti]          # lane-boundary static slices (ti % 128 == 0 or ti == I)
    up = gu[:, ti:]

    # SiLU(gate) * up in f32 (VPU + EUP), cast back to activation dtype for the MXU.
    hidden = (gate * jax.nn.sigmoid(gate) * up).astype(x.dtype)

    # Partial down_proj: (TM, D) += hidden @ wd_tile
    acc_ref[...] += lax.dot_general(hidden, wd_ref[...], _DN_NT,
                                    preferred_element_type=jnp.float32)

    @pl.when(i_step == pl.num_programs(1) - 1)
    def _():
        o_ref[...] = acc_ref[...].astype(o_ref.dtype)


# ----------------------------------------------------------------------------- utils


def _round_up(x, m):
    return ((x + m - 1) // m) * m


def _cdiv(a, b):
    return (a + b - 1) // b


def _vmem_capacity_bytes():
    """Physical VMEM per TensorCore (v5e/v6e: 128 MiB, v7x: 64 MiB)."""
    try:
        return int(pltpu.get_tpu_info().vmem_capacity_bytes)
    except Exception:
        return 64 << 20  # conservative fallback


def _vmem_footprint(tm, ti, d, itemsize):
    """Estimated VMEM working set for one grid step (double-buffered blocks,
    f32 accumulator, and Mosaic's f32 matmul / elementwise temporaries)."""
    x_blocks = 2 * tm * d * itemsize                 # activation tiles (double-buffered)
    out_blocks = 2 * tm * d * itemsize               # output tiles
    w_blocks = 2 * (2 * ti + ti) * d * itemsize      # fused gate|up + down weight tiles
    acc = tm * d * 4                                 # f32 accumulator scratch
    temps = 3 * tm * (2 * ti) * 4 + tm * ti * itemsize  # gu / silu*up f32 temps + hidden
    return x_blocks + out_blocks + w_blocks + acc + temps


def _ti_candidates(int_size, target):
    cands = [t for t in range(128, min(int_size, target) + 1, 128) if int_size % t == 0]
    if not cands:
        return [int_size]  # full reduction dim (single I step) — always layout-legal
    return sorted(cands, reverse=True)


def _tm_candidates(m, target, align):
    tm0 = max(align, min(_round_up(target, align), _round_up(m, align)))
    # Guarantee >= 2 M-tiles (megacore sharding of the "parallel" axis) when M allows.
    if m > align and _cdiv(m, tm0) < 2:
        tm0 = max(align, _round_up(_cdiv(m, 2), align))
    cands = []
    t = tm0
    while t >= align:
        ta = max(align, (t // align) * align)
        if not cands or ta != cands[-1]:
            cands.append(ta)
        if ta == align:
            break
        t //= 2
    return cands


def _choose_tiles(m, int_size, d, itemsize, align_m, target_tm, target_ti, budget):
    tm_list = _tm_candidates(m, target_tm, align_m)
    ti_list = _ti_candidates(int_size, target_ti)
    for tm in tm_list:
        for ti in ti_list:
            if _vmem_footprint(tm, ti, d, itemsize) <= budget:
                return tm, ti
    return tm_list[-1], ti_list[-1]


# --------------------------------------------------------------------------- wrapper


def llama_mlp(x, w_gate, w_up, w_down, *, tm=None, ti=None):
    """LlamaMLP forward.

    x: (B, S, D). Weights in PyTorch layout: w_gate, w_up: (I, D); w_down: (D, I).
    The wrapper prepares (transposes + fuses) the weights once; cache the prepared
    weights across calls in production code.
    """
    B, S, D = x.shape
    I, D2 = w_gate.shape
    assert D2 == D and w_up.shape == (I, D) and w_down.shape == (D, I)
    M = B * S

    itemsize = jnp.dtype(x.dtype).itemsize
    w_itemsize = jnp.dtype(w_gate.dtype).itemsize
    # Dtype-aware sublane alignment: f32 -> 8, bf16 -> 16, int8/fp8 -> 32.
    align_m = max(8, 32 // itemsize)

    # Generation-aware tile targets + VMEM budget.
    vmem_cap = _vmem_capacity_bytes()
    big_vmem = vmem_cap >= (96 << 20)        # v5e/v6e (128 MiB) vs v7x (64 MiB)
    target_tm = 768 if big_vmem else 512     # weight-reuse factor ~= arithmetic intensity
    target_ti = 512 if big_vmem else 256     # keep double-buffered weight tiles in budget
    budget = max(vmem_cap - (12 << 20), 24 << 20)

    if tm is None or ti is None:
        tm_auto, ti_auto = _choose_tiles(M, I, D, itemsize, align_m,
                                         target_tm, target_ti, budget)
        tm = tm if tm is not None else tm_auto
        ti = ti if ti is not None else ti_auto

    assert tm % 8 == 0, "tm must be a multiple of 8 (sublane layout)"
    assert I % ti == 0 and (ti == I or ti % 128 == 0), (
        "ti must divide int_size and be a multiple of 128 (or equal int_size)")

    # Pad ragged M up to a tile multiple; padded zero rows flow through to zero
    # outputs and are sliced off below.
    M_p = _round_up(M, tm)
    x2d = x.reshape(M, D)
    if M_p != M:
        x2d = jnp.pad(x2d, ((0, M_p - M), (0, 0)))

    # One-time weight prep:
    #   gate/up pre-transposed to (D, I) and fused per ti-tile -> (D, 2*I) so each
    #   grid step is a single (TM, 2*ti) matmul; down pre-transposed to (I, D).
    nI = I // ti
    wgu = jnp.concatenate(
        [w_gate.T.reshape(D, nI, ti), w_up.T.reshape(D, nI, ti)], axis=2
    ).reshape(D, 2 * I)
    wd_t = w_down.T  # (I, D)

    n_m_tiles = M_p // tm
    footprint = _vmem_footprint(tm, ti, D, itemsize)
    # Cap at the *physical* capacity minus headroom (never request VMEM that
    # doesn't exist on v7x); otherwise footprint + generous headroom.
    vmem_limit = int(min(vmem_cap - (4 << 20),
                         max(footprint + (16 << 20), 32 << 20)))

    cost = pl.CostEstimate(
        flops=6 * M * D * I,                                    # three (fused) matmuls
        transcendentals=M * I,                                  # sigmoid
        bytes_accessed=2 * M * D * itemsize                     # read x + write out
        + n_m_tiles * 3 * I * D * w_itemsize,                   # weights re-streamed per M-tile
    )

    out2d = pl.pallas_call(
        llama_mlp_kernel,
        out_shape=jax.ShapeDtypeStruct((M_p, D), x.dtype),
        grid_spec=pltpu.PrefetchScalarGridSpec(
            num_scalar_prefetch=0,
            grid=(n_m_tiles, nI),
            in_specs=[
                pl.BlockSpec((tm, D), lambda m, i: (m, 0)),       # x tile
                pl.BlockSpec((D, 2 * ti), lambda m, i: (0, i)),   # fused [gate|up] weights
                pl.BlockSpec((ti, D), lambda m, i: (i, 0)),       # down_proj weights
            ],
            out_specs=pl.BlockSpec((tm, D), lambda m, i: (m, 0)),  # lane-dense (tm, D)
            scratch_shapes=[pltpu.VMEM((tm, D), jnp.float32)],
        ),
        compiler_params=pltpu.CompilerParams(
            dimension_semantics=("parallel", "arbitrary"),
            vmem_limit_bytes=vmem_limit,
        ),
        cost_estimate=cost,
    )(x2d, wgu, wd_t)

    return out2d[:M].reshape(B, S, D)


if __name__ == "__main__":
    # Small-but-tileable config: n_embd=128, int_size=512, batch=2, seq=64.
    B, S, D, I = 2, 64, 128, 512

    key = jax.random.PRNGKey(0)
    kx, kg, ku, kd = jax.random.split(key, 4)

    x = jax.random.normal(kx, (B, S, D), dtype=jnp.float32)
    # PyTorch weight layout: (out_features, in_features)
    w_gate = jax.random.normal(kg, (I, D), dtype=jnp.float32) * 0.05
    w_up = jax.random.normal(ku, (I, D), dtype=jnp.float32) * 0.05
    w_down = jax.random.normal(kd, (D, I), dtype=jnp.float32) * 0.05

    # Pure-JAX reference (full f32 matmul precision for a tight comparison).
    with jax.default_matmul_precision("highest"):
        gate = x @ w_gate.T
        up = x @ w_up.T
        ref = (gate * jax.nn.sigmoid(gate) * up) @ w_down.T

    # Explicit tiles force a multi-tile grid (2 M-tiles x 4 I-tiles) to exercise the
    # accumulator init/accumulate/finalize path.
    out = llama_mlp(x, w_gate, w_up, w_down, tm=64, ti=128)
    jax.block_until_ready(out)
    assert out.shape == (B, S, D)
    assert jnp.allclose(out, ref, atol=2e-3, rtol=2e-3), (
        float(jnp.max(jnp.abs(out - ref))))

    # Auto tile picker (chip-aware targets + VMEM budget).
    out_auto = llama_mlp(x, w_gate, w_up, w_down)
    jax.block_until_ready(out_auto)
    assert jnp.allclose(out_auto, ref, atol=2e-3, rtol=2e-3)

    # Ragged-M path: M = 2*63 = 126 is not a tile multiple -> zero-padded to 128.
    x_ragged = x[:, :63, :]
    out_r = llama_mlp(x_ragged, w_gate, w_up, w_down, tm=64, ti=128)
    jax.block_until_ready(out_r)
    assert jnp.allclose(out_r, ref[:, :63, :], atol=2e-3, rtol=2e-3)

    print("KERNEL_OK")
</pallas_src>

<mosaic_0001>
module attributes {stable_mosaic.version = 11 : i64} {
  func.func @llama_mlp_kernel(%arg0: i32, %arg1: i32, %arg2: memref<64x128xf32, #tpu.memory_space<vmem>>, %arg3: memref<128x256xf32, #tpu.memory_space<vmem>>, %arg4: memref<128x128xf32, #tpu.memory_space<vmem>>, %arg5: memref<64x128xf32, #tpu.memory_space<vmem>>, %arg6: memref<64x128xf32, #tpu.memory_space<vmem>>) attributes {dimension_semantics = [#tpu.dimension_semantics<parallel>, #tpu.dimension_semantics<arbitrary>], iteration_bounds = array<i64: 2, 4>, scalar_prefetch = 0 : i64, scratch_operands = 1 : i64, tpu.core_type = #tpu.core_type<tc>, window_params = [{transform_indices = @transform_0, window_bounds = array<i64: 64, 128>}, {transform_indices = @transform_1, window_bounds = array<i64: 128, 256>}, {transform_indices = @transform_2, window_bounds = array<i64: 128, 128>}, {transform_indices = @transform_3, window_bounds = array<i64: 64, 128>}]} {
    %c0_i32 = arith.constant 0 : i32
    %0 = arith.cmpi eq, %arg1, %c0_i32 : i32
    %1 = arith.extui %0 : i1 to i32
    %c0_i32_0 = arith.constant 0 : i32
    %2 = arith.cmpi ne, %1, %c0_i32_0 : i32
    scf.if %2 {
      %cst_13 = arith.constant 0.000000e+00 : f32
      %23 = vector.broadcast %cst_13 : f32 to vector<64x128xf32>
      %c0_14 = arith.constant 0 : index
      %c0_15 = arith.constant 0 : index
      %24 = vector.load %arg6[%c0_14, %c0_15] : memref<64x128xf32, #tpu.memory_space<vmem>>, vector<64x128xf32>
      tpu.vector_store %arg6[%c0_14, %c0_15], %23 {strides = array<i32>} : memref<64x128xf32, #tpu.memory_space<vmem>>, vector<64x128xf32>,
    } else {
    }
    %c0 = arith.constant 0 : index
    %c0_1 = arith.constant 0 : index
    %3 = vector.load %arg2[%c0, %c0_1] : memref<64x128xf32, #tpu.memory_space<vmem>>, vector<64x128xf32>
    %c0_2 = arith.constant 0 : index
    %c0_3 = arith.constant 0 : index
    %4 = vector.load %arg3[%c0_2, %c0_3] : memref<128x256xf32, #tpu.memory_space<vmem>>, vector<128x256xf32>
    %cst = arith.constant dense<0.000000e+00> : vector<64x256xf32>
    %5 = tpu.matmul %3, %4, %cst {dimension_numbers = #tpu.dot_dimension_numbers<[1], [0], [0], [1], [0, 0, 1, 1], [], []>} : vector<64x128xf32>, vector<128x256xf32>, vector<64x256xf32> -> vector<64x256xf32>
    %6 = vector.extract_strided_slice %5 {offsets = [0, 0], sizes = [64, 128], strides = [1, 1]} : vector<64x256xf32> to vector<64x128xf32>
    %7 = vector.extract_strided_slice %5 {offsets = [0, 128], sizes = [64, 128], strides = [1, 1]} : vector<64x256xf32> to vector<64x128xf32>
    %8 = arith.negf %6 : vector<64x128xf32>
    %9 = math.exp %8 : vector<64x128xf32>
    %cst_4 = arith.constant 1.000000e+00 : f32
    %10 = vector.broadcast %cst_4 : f32 to vector<64x128xf32>
    %11 = arith.addf %10, %9 : vector<64x128xf32>
    %12 = arith.divf %10, %11 : vector<64x128xf32>
    %13 = arith.mulf %6, %12 : vector<64x128xf32>
    %14 = arith.mulf %13, %7 : vector<64x128xf32>
    %c0_5 = arith.constant 0 : index
    %c0_6 = arith.constant 0 : index
    %15 = vector.load %arg6[%c0_5, %c0_6] : memref<64x128xf32, #tpu.memory_space<vmem>>, vector<64x128xf32>
    %c0_7 = arith.constant 0 : index
    %c0_8 = arith.constant 0 : index
    %16 = vector.load %arg4[%c0_7, %c0_8] : memref<128x128xf32, #tpu.memory_space<vmem>>, vector<128x128xf32>
    %cst_9 = arith.constant dense<0.000000e+00> : vector<64x128xf32>
    %17 = tpu.matmul %14, %16, %cst_9 {dimension_numbers = #tpu.dot_dimension_numbers<[1], [0], [0], [1], [0, 0, 1, 1], [], []>} : vector<64x128xf32>, vector<128x128xf32>, vector<64x128xf32> -> vector<64x128xf32>
    %18 = arith.addf %15, %17 : vector<64x128xf32>
    %c0_10 = arith.constant 0 : index
    %c0_11 = arith.constant 0 : index
    %19 = vector.load %arg6[%c0_10, %c0_11] : memref<64x128xf32, #tpu.memory_space<vmem>>, vector<64x128xf32>
    tpu.vector_store %arg6[%c0_10, %c0_11], %18 {strides = array<i32>} : memref<64x128xf32, #tpu.memory_space<vmem>>, vector<64x128xf32>,
    %c3_i32 = arith.constant 3 : i32
    %20 = arith.cmpi eq, %arg1, %c3_i32 : i32
    %21 = arith.extui %20 : i1 to i32
    %c0_i32_12 = arith.constant 0 : i32
    %22 = arith.cmpi ne, %21, %c0_i32_12 : i32
    scf.if %22 {
      %c0_13 = arith.constant 0 : index
      %c0_14 = arith.constant 0 : index
      %23 = vector.load %arg6[%c0_13, %c0_14] : memref<64x128xf32, #tpu.memory_space<vmem>>, vector<64x128xf32>
      %c0_15 = arith.constant 0 : index
      %c0_16 = arith.constant 0 : index
      %24 = vector.load %arg5[%c0_15, %c0_16] : memref<64x128xf32, #tpu.memory_space<vmem>>, vector<64x128xf32>
      tpu.vector_store %arg5[%c0_15, %c0_16], %23 {strides = array<i32>} : memref<64x128xf32, #tpu.memory_space<vmem>>, vector<64x128xf32>,
    } else {
    }
    return
  }
  func.func @transform_0(%arg0: i32, %arg1: i32) -> (i32, i32) {
    %c0_i32 = arith.constant 0 : i32
    %c0_i32_0 = arith.constant 0 : i32
    return %arg0, %c0_i32 : i32, i32
  }
  func.func @transform_1(%arg0: i32, %arg1: i32) -> (i32, i32) {
    %c0_i32 = arith.constant 0 : i32
    %c0_i32_0 = arith.constant 0 : i32
    return %c0_i32, %arg1 : i32, i32
  }
  func.func @transform_2(%arg0: i32, %arg1: i32) -> (i32, i32) {
    %c0_i32 = arith.constant 0 : i32
    %c0_i32_0 = arith.constant 0 : i32
    return %arg1, %c0_i32 : i32, i32
  }
  func.func @transform_3(%arg0: i32, %arg1: i32) -> (i32, i32) {
    %c0_i32 = arith.constant 0 : i32
    %c0_i32_0 = arith.constant 0 : i32
    return %arg0, %c0_i32 : i32, i32
  }
}

</mosaic_0001>

<llo_original>
// kernel: tpu_custom_call.1
$region0: #{tpu_custom_call.1}
  #allocation0 [shape = 'u32[]', space=smem, size = 0x4, offset = 0x4, fixed_abs, tag = 'smem constant byte address 0x4 - core index']
  #allocation1 [shape = 'u32[144,128]{1,0:T(1,128)}', space=vmem, size = 0x12000, scoped, tag = 'internal scratch']
  #allocation2 [shape = 'f32[64,128]{1,0:T(8,128)}', space=vmem, size = 0x8000, scoped, tag = 'scratch operand']
  %s0 = inlined_call_operand.hbm [shape: f32[128,128], index: 0, kind: input, shape index: {}]
  %s1 = inlined_call_operand.hbm [shape: f32[128,1024], index: 1, kind: input, shape index: {}]
  %s2 = inlined_call_operand.hbm [shape: f32[512,128], index: 2, kind: input, shape index: {}]
  %s3 = inlined_call_operand.hbm [shape: f32[128,128], index: 3, kind: output, shape index: {}]
  %s4 = sld [smem:[#allocation0]]
  $region65: #{tpu_custom_call.1} parent=0
    _
  %s6 = ssub.s32 1, %s4
  %s7 = scalar_select 0, %s6, %s4
  $region1: #{tpu_custom_call.1} parent=0
    #allocation3 [shape = 'u8[65536]{0}', space=vmem, size = 0x10000, scoped, tag = 'input window, operand 0']
    #allocation4 [shape = 's32[2]{0}', space=sflag, size = 0x8, scoped, tag = 'scoped memory for tpu_custom_call.1']
    #allocation5 [shape = 's32[2]{0}', space=sflag, size = 0x8, scoped, tag = 'scoped memory for tpu_custom_call.1']
    #allocation6 [shape = 'u8[262144]{0}', space=vmem, size = 0x40000, scoped, tag = 'input window, operand 1']
    #allocation7 [shape = 's32[2]{0}', space=sflag, size = 0x8, scoped, tag = 'scoped memory for tpu_custom_call.1']
    #allocation8 [shape = 'u8[131072]{0}', space=vmem, size = 0x20000, scoped, tag = 'input window, operand 2']
    #allocation9 [shape = 'u8[65536]{0}', space=vmem, size = 0x10000, scoped, tag = 'output window, operand 0']
    %8 = vsyncpa [#allocation4], 0
    %s9 = scalar_lea.sflag [#allocation4], 1
    %10 = vsyncpa %s9, 0
    %11 = vsyncpa [#allocation7], 0
    %s12 = scalar_lea.sflag [#allocation7], 1
    %13 = vsyncpa %s12, 0
    %14 = vsyncpa [#allocation5], 0
    %s15 = scalar_lea.sflag [#allocation5], 1
    %16 = vsyncpa %s15, 0
    loop: start=0, step=1, limit=10
    $region2: #{tpu_custom_call.1} parent=1 // loop_pre_header
      _
    $region3: #{tpu_custom_call.1} parent=1 // loop_header
      %s18 = sphi 0, %s22
      %p19 = scmp.ge.s32.totalorder %s18, 10
      %s25 = sphi 0, %s37
      %s26 = sphi 0, %s33
      %s27 = sphi 0, %s25
      %s28 = sphi 0, %s26
      %s29 = sphi 0, %s27
      %s30 = sphi 0, %s28
      %s40 = sphi 0, %s42
      %s43 = sphi 0, %s40
      %s44 = sphi 0, %s43
      %s60 = sphi 0, %s44
      %s66 = sphi 0, %s68
      %s69 = sphi 0, %s66
      %s70 = sphi 0, %s69
      %s86 = sphi 0, %s70
      %s92 = sphi 0, %s94
      %s95 = sphi 0, %s92
      %s96 = sphi 0, %s95
      %s112 = sphi 0, %s96
      %s118 = sphi 0, %s120
      %s121 = sphi 0, %s118
      %s122 = sphi 0, %s121
      %s138 = sphi 0, %s122
    $region4: #{tpu_custom_call.1} parent=1 // loop_header_branch
      %21 = sbr.rel (%p19) target = $region8
    $region5: #{tpu_custom_call.1} parent=1 // loop_body
      %s23 = ssub.s32 %s18, 1
      %s24 = ssub.s32 %s18, 2
      %s31 = sadd.s32 1, %s26
      %p32 = scmp.ge.s32.totalorder %s31, 4
      %s33 = scalar_select %p32, 0, %s31
      %s34 = sadd.s32 1, %s25
      %s35 = scalar_select %p32, %s34, %s25
      %p36 = scmp.ge.s32.totalorder %s35, 2
      %s37 = scalar_select %p36, 0, %s35
      %s38 = ssub.s32 %s25, %s37
      %p39 = scmp.eq.s32.totalorder %s38, 0
      %s41 = sadd.s32 %s40, 1
      %s42 = scalar_select %p39, %s40, %s41
      %p45 = pneg %p39
      %p46 = scmp.eq.s32.totalorder %s18, 7
      %p47 = por %p45, %p46
      %p48 = scmp.ne.s32.totalorder %s40, %s43
      %p49 = scmp.eq.s32.totalorder %s18, 0
      %p50 = por %p48, %p49
      %p51 = scmp.ne.s32.totalorder %s40, %s43
      %p52 = scmp.eq.s32.totalorder %s23, 7
      %p53 = por %p51, %p52
      %p54 = scmp.ne.s32.totalorder %s43, %s44
      %p55 = scmp.eq.s32.totalorder %s23, 0
      %p56 = por %p54, %p55
      %p57 = scmp.ne.s32.totalorder %s43, %s44
      %p58 = scmp.eq.s32.totalorder %s24, 7
      %p59 = por %p57, %p58
      %p61 = scmp.ne.s32.totalorder %s44, %s60
      %p62 = scmp.eq.s32.totalorder %s24, 0
      %p63 = por %p61, %p62
      %s64 = ssub.s32 %s26, %s33
      %p65 = scmp.eq.s32.totalorder %s64, 0
      %s67 = sadd.s32 %s66, 1
      %s68 = scalar_select %p65, %s66, %s67
      %p71 = pneg %p65
      %p72 = scmp.eq.s32.totalorder %s18, 7
      %p73 = por %p71, %p72
      %p74 = scmp.ne.s32.totalorder %s66, %s69
      %p75 = scmp.eq.s32.totalorder %s18, 0
      %p76 = por %p74, %p75
      %p77 = scmp.ne.s32.totalorder %s66, %s69
      %p78 = scmp.eq.s32.totalorder %s23, 7
      %p79 = por %p77, %p78
      %p80 = scmp.ne.s32.totalorder %s69, %s70
      %p81 = scmp.eq.s32.totalorder %s23, 0
      %p82 = por %p80, %p81
      %p83 = scmp.ne.s32.totalorder %s69, %s70
      %p84 = scmp.eq.s32.totalorder %s24, 7
      %p85 = por %p83, %p84
      %p87 = scmp.ne.s32.totalorder %s70, %s86
      %p88 = scmp.eq.s32.totalorder %s24, 0
      %p89 = por %p87, %p88
      %s90 = ssub.s32 %s26, %s33
      %p91 = scmp.eq.s32.totalorder %s90, 0
      %s93 = sadd.s32 %s92, 1
      %s94 = scalar_select %p91, %s92, %s93
      %p97 = pneg %p91
      %p98 = scmp.eq.s32.totalorder %s18, 7
      %p99 = por %p97, %p98
      %p100 = scmp.ne.s32.totalorder %s92, %s95
      %p101 = scmp.eq.s32.totalorder %s18, 0
      %p102 = por %p100, %p101
      %p103 = scmp.ne.s32.totalorder %s92, %s95
      %p104 = scmp.eq.s32.totalorder %s23, 7
      %p105 = por %p103, %p104
      %p106 = scmp.ne.s32.totalorder %s95, %s96
      %p107 = scmp.eq.s32.totalorder %s23, 0
      %p108 = por %p106, %p107
      %p109 = scmp.ne.s32.totalorder %s95, %s96
      %p110 = scmp.eq.s32.totalorder %s24, 7
      %p111 = por %p109, %p110
      %p113 = scmp.ne.s32.totalorder %s96, %s112
      %p114 = scmp.eq.s32.totalorder %s24, 0
      %p115 = por %p113, %p114
      %s116 = ssub.s32 %s25, %s37
      %p117 = scmp.eq.s32.totalorder %s116, 0
      %s119 = sadd.s32 %s118, 1
      %s120 = scalar_select %p117, %s118, %s119
      %p123 = pneg %p117
      %p124 = scmp.eq.s32.totalorder %s18, 7
      %p125 = por %p123, %p124
      %p126 = scmp.ne.s32.totalorder %s118, %s121
      %p127 = scmp.eq.s32.totalorder %s18, 0
      %p128 = por %p126, %p127
      %p129 = scmp.ne.s32.totalorder %s118, %s121
      %p130 = scmp.eq.s32.totalorder %s23, 7
      %p131 = por %p129, %p130
      %p132 = scmp.ne.s32.totalorder %s121, %s122
      %p133 = scmp.eq.s32.totalorder %s23, 0
      %p134 = por %p132, %p133
      %p135 = scmp.ne.s32.totalorder %s121, %s122
      %p136 = scmp.eq.s32.totalorder %s24, 7
      %p137 = por %p135, %p136
      %p139 = scmp.ne.s32.totalorder %s122, %s138
      %p140 = scmp.eq.s32.totalorder %s24, 0
      %p141 = por %p139, %p140
      %p142 = scmp.le.s32.totalorder 1, %s18
      %p143 = scmp.lt.s32.totalorder %s18, 9
      %p144 = pnand %p142, %p143
      %p145 = pneg %p144
      // Predicated region
      $region9: #{tpu_custom_call.1} parent=5 // pred_check
        _
      $region10: #{tpu_custom_call.1} parent=5 // pred_check_branch
        %147 = sbr.rel (%p144) target = $region12
      $region11: #{tpu_custom_call.1} parent=5 // pred_region
        %s148 = ssub.s32 %s18, 1
      $region12: #{tpu_custom_call.1} parent=5 // pred_fallthru
        _
      %p149 = scmp.lt.s32.totalorder %s18, 8
      // Predicated region
      $region13: #{tpu_custom_call.1} parent=5 // pred_check
        %p150 = pneg %p149
      $region14: #{tpu_custom_call.1} parent=5 // pred_check_branch
        %152 = sbr.rel (%p150) target = $region16
      $region15: #{tpu_custom_call.1} parent=5 // pred_region
        // Predicated region
        $region17: #{tpu_custom_call.1} parent=15 // pred_check
          %p153 = pneg %p50
        $region18: #{tpu_custom_call.1} parent=15 // pred_check_branch
          %155 = sbr.rel (%p153) target = $region20
        $region19: #{tpu_custom_call.1} parent=15 // pred_region
          %s156 = sand.u32 %s40, 1
          %s157 = scalar_lea.sflag [#allocation4], %s156
          %s158 = sand.u32 %s40, 1
          %s159 = smul.addr %s158, 64
          %s160 = scalar_lea.vmem [#allocation3], %s159
          %s161 = smul.u32 8, %s25
          %s163 = ssub.s32 1024, 1024
          %164 = vsyncadd %s157, %s163
          %s165 = smul.addr %s161, 128
          %s166 = scalar_lea.hbm %s0, %s165
          %s167 = sshll.u32 %s160, 4
          %s168 = int_to_ptr.vmem [resolvable:$true] %s167
          %173 = dma.hbm_to_vmem [thread:$0]  %s166, 1024, %s168, %s157, 128, 128, 8
        $region20: #{tpu_custom_call.1} parent=15 // pred_fallthru
          _
        // Predicated region
        $region21: #{tpu_custom_call.1} parent=15 // pred_check
          %p174 = pneg %p76
        $region22: #{tpu_custom_call.1} parent=15 // pred_check_branch
          %176 = sbr.rel (%p174) target = $region24
        $region23: #{tpu_custom_call.1} parent=15 // pred_region
          %s177 = sand.u32 %s18, 1
          %s178 = scalar_lea.sflag [#allocation7], %s177
          %s179 = sand.u32 %s66, 1
          %s180 = smul.addr %s179, 256
          %s181 = scalar_lea.vmem [#allocation6], %s180
          %s182 = smul.u32 2, %s26
          %s184 = ssub.s32 4096, 4096
          %185 = vsyncadd %s178, %s184
          %s186 = smul.addr %s182, 128
          %s187 = scalar_lea.hbm %s1, %s186
          %s188 = sshll.u32 %s181, 4
          %s189 = int_to_ptr.vmem [resolvable:$true] %s188
          %194 = dma.hbm_to_vmem [thread:$0]  %s187, 4096, %s189, %s178, 1024, 256, 16
        $region24: #{tpu_custom_call.1} parent=15 // pred_fallthru
          _
        // Predicated region
        $region25: #{tpu_custom_call.1} parent=15 // pred_check
          %p195 = pneg %p102
        $region26: #{tpu_custom_call.1} parent=15 // pred_check_branch
          %197 = sbr.rel (%p195) target = $region28
        $region27: #{tpu_custom_call.1} parent=15 // pred_region
          %s198 = sand.u32 %s18, 1
          %s199 = scalar_lea.sflag [#allocation7], %s198
          %s200 = sand.u32 %s92, 1
          %s201 = smul.addr %s200, 128
          %s202 = scalar_lea.vmem [#allocation8], %s201
          %s203 = smul.u32 16, %s26
          %s205 = ssub.s32 2048, 2048
          %206 = vsyncadd %s199, %s205
          %s207 = smul.addr %s203, 128
          %s208 = scalar_lea.hbm %s2, %s207
          %s209 = sshll.u32 %s202, 4
          %s210 = int_to_ptr.vmem [resolvable:$true] %s209
          %215 = dma.hbm_to_vmem [thread:$0]  %s208, 2048, %s210, %s199, 128, 128, 8
        $region28: #{tpu_custom_call.1} parent=15 // pred_fallthru
          _
      $region16: #{tpu_custom_call.1} parent=5 // pred_fallthru
        _
      %p216 = scmp.le.s32.totalorder 1, %s18
      %p217 = scmp.lt.s32.totalorder %s18, 9
      %p218 = pnand %p216, %p217
      %p219 = pneg %p218
      // Predicated region
      $region29: #{tpu_custom_call.1} parent=5 // pred_check
        _
      $region30: #{tpu_custom_call.1} parent=5 // pred_check_branch
        %221 = sbr.rel (%p218) target = $region32
      $region31: #{tpu_custom_call.1} parent=5 // pred_region
        %s222 = ssub.s32 %s18, 1
        %s223 = sand.u32 %s43, 1
        %s224 = scalar_lea.sflag [#allocation4], %s223
        %s225 = sand.u32 %s43, 1
        %s226 = smul.addr %s225, 64
        %s227 = scalar_lea.vmem [#allocation3], %s226
        // Predicated region
        $region33: #{tpu_custom_call.1} parent=31 // pred_check
          %p228 = pneg %p56
        $region34: #{tpu_custom_call.1} parent=31 // pred_check_branch
          %230 = sbr.rel (%p228) target = $region36
        $region35: #{tpu_custom_call.1} parent=31 // pred_region
          %231 = dma.done %s224, 1024
        $region36: #{tpu_custom_call.1} parent=31 // pred_fallthru
          _
        %s232 = sand.u32 %s23, 1
        %s233 = scalar_lea.sflag [#allocation7], %s232
        %s234 = sand.u32 %s69, 1
        %s235 = smul.addr %s234, 256
        %s236 = scalar_lea.vmem [#allocation6], %s235
        // Predicated region
        $region37: #{tpu_custom_call.1} parent=31 // pred_check
          %p237 = pneg %p82
        $region38: #{tpu_custom_call.1} parent=31 // pred_check_branch
          %239 = sbr.rel (%p237) target = $region40
        $region39: #{tpu_custom_call.1} parent=31 // pred_region
          %240 = dma.done %s233, 4096
        $region40: #{tpu_custom_call.1} parent=31 // pred_fallthru
          _
        %s241 = sand.u32 %s23, 1
        %s242 = scalar_lea.sflag [#allocation7], %s241
        %s243 = sand.u32 %s95, 1
        %s244 = smul.addr %s243, 128
        %s245 = scalar_lea.vmem [#allocation8], %s244
        // Predicated region
        $region41: #{tpu_custom_call.1} parent=31 // pred_check
          %p246 = pneg %p108
        $region42: #{tpu_custom_call.1} parent=31 // pred_check_branch
          %248 = sbr.rel (%p246) target = $region44
        $region43: #{tpu_custom_call.1} parent=31 // pred_region
          %249 = dma.done %s242, 2048
        $region44: #{tpu_custom_call.1} parent=31 // pred_fallthru
          _
        %s250 = sand.u32 %s43, 1
        %s251 = scalar_lea.sflag [#allocation4], %s250
        %s252 = sand.u32 %s43, 1
        %s253 = smul.addr %s252, 64
        %s254 = scalar_lea.vmem [#allocation3], %s253
        %p255 = pneg %p56
        %p256 = pneg %p53
        %s257 = sand.u32 %s23, 1
        %s258 = scalar_lea.sflag [#allocation7], %s257
        %s259 = sand.u32 %s69, 1
        %s260 = smul.addr %s259, 256
        %s261 = scalar_lea.vmem [#allocation6], %s260
        %p262 = pneg %p82
        %p263 = pneg %p79
        %s264 = sand.u32 %s23, 1
        %s265 = scalar_lea.sflag [#allocation7], %s264
        %s266 = sand.u32 %s95, 1
        %s267 = smul.addr %s266, 128
        %s268 = scalar_lea.vmem [#allocation8], %s267
        %p269 = pneg %p108
        %p270 = pneg %p105
        %p271 = pneg %p134
        %p272 = pneg %p131
        %s273 = sand.u32 %s121, 1
        %s274 = scalar_lea.sflag [#allocation5], %s273
        %s275 = sand.u32 %s121, 1
        %s276 = smul.addr %s275, 64
        %s277 = scalar_lea.vmem [#allocation9], %s276
        %s278 = smul.u32 8, %s27
        %s279 = smul.u32 2, %s28
        %s280 = smul.u32 16, %s28
        %s281 = smul.u32 8, %s27
        %p282 = scmp.eq.s32.totalorder %s28, 0
        // Predicated region
        $region45: #{tpu_custom_call.1} parent=31 // pred_check
          %p283 = pneg %p282
        $region46: #{tpu_custom_call.1} parent=31 // pred_check_branch
          %285 = sbr.rel (%p283) target = $region48
        $region47: #{tpu_custom_call.1} parent=31 // pred_region
          %286 = vst [vmem:[#allocation2] sm:$0xff] 0.0
          %287 = vst [vmem:[#allocation2 + $0x8] sm:$0xff] 0.0
          %288 = vst [vmem:[#allocation2 + $0x10] sm:$0xff] 0.0
          %289 = vst [vmem:[#allocation2 + $0x18] sm:$0xff] 0.0
          %290 = vst [vmem:[#allocation2 + $0x20] sm:$0xff] 0.0
          %291 = vst [vmem:[#allocation2 + $0x28] sm:$0xff] 0.0
          %292 = vst [vmem:[#allocation2 + $0x30] sm:$0xff] 0.0
          %293 = vst [vmem:[#allocation2 + $0x38] sm:$0xff] 0.0
        $region48: #{tpu_custom_call.1} parent=31 // pred_fallthru
          _
        %v294 = vld [vmem:[%s227] sm:$0xff]
        %v295 = vld [vmem:[%s227 + $0x8] sm:$0xff]
        %v296 = vld [vmem:[%s227 + $0x10] sm:$0xff]
        %v297 = vld [vmem:[%s227 + $0x18] sm:$0xff]
        %v298 = vld [vmem:[%s227 + $0x20] sm:$0xff]
        %v299 = vld [vmem:[%s227 + $0x28] sm:$0xff]
        %v300 = vld [vmem:[%s227 + $0x30] sm:$0xff]
        %v301 = vld [vmem:[%s227 + $0x38] sm:$0xff]
        %v302 = vld [vmem:[%s236] sm:$0xff]
        %v303 = vld [vmem:[%s236 + $0x8] sm:$0xff]
        %v304 = vld [vmem:[%s236 + $0x10] sm:$0xff]
        %v305 = vld [vmem:[%s236 + $0x18] sm:$0xff]
        %v306 = vld [vmem:[%s236 + $0x20] sm:$0xff]
        %v307 = vld [vmem:[%s236 + $0x28] sm:$0xff]
        %v308 = vld [vmem:[%s236 + $0x30] sm:$0xff]
        %v309 = vld [vmem:[%s236 + $0x38] sm:$0xff]
        %v310 = vld [vmem:[%s236 + $0x40] sm:$0xff]
        %v311 = vld [vmem:[%s236 + $0x48] sm:$0xff]
        %v312 = vld [vmem:[%s236 + $0x50] sm:$0xff]
        %v313 = vld [vmem:[%s236 + $0x58] sm:$0xff]
        %v314 = vld [vmem:[%s236 + $0x60] sm:$0xff]
        %v315 = vld [vmem:[%s236 + $0x68] sm:$0xff]
        %v316 = vld [vmem:[%s236 + $0x70] sm:$0xff]
        %v317 = vld [vmem:[%s236 + $0x78] sm:$0xff]
        %v318 = vld [vmem:[%s236 + $0x80] sm:$0xff]
        %v319 = vld [vmem:[%s236 + $0x88] sm:$0xff]
        %v320 = vld [vmem:[%s236 + $0x90] sm:$0xff]
        %v321 = vld [vmem:[%s236 + $0x98] sm:$0xff]
        %v322 = vld [vmem:[%s236 + $0xa0] sm:$0xff]
        %v323 = vld [vmem:[%s236 + $0xa8] sm:$0xff]
        %v324 = vld [vmem:[%s236 + $0xb0] sm:$0xff]
        %v325 = vld [vmem:[%s236 + $0xb8] sm:$0xff]
        %v326 = vld [vmem:[%s236 + $0xc0] sm:$0xff]
        %v327 = vld [vmem:[%s236 + $0xc8] sm:$0xff]
        %v328 = vld [vmem:[%s236 + $0xd0] sm:$0xff]
        %v329 = vld [vmem:[%s236 + $0xd8] sm:$0xff]
        %v330 = vld [vmem:[%s236 + $0xe0] sm:$0xff]
        %v331 = vld [vmem:[%s236 + $0xe8] sm:$0xff]
        %v332 = vld [vmem:[%s236 + $0xf0] sm:$0xff]
        %v333 = vld [vmem:[%s236 + $0xf8] sm:$0xff]
        %334 = vmatprep.subr.mxu0 %v333
        %335 = vmatpush1.msra.mxu0 %v332
        %336 = vmatprep.subr.mxu0 %v331
        %337 = vmatpush1.msra.mxu0 %v330
        %338 = vmatprep.subr.mxu0 %v329
        %339 = vmatpush1.msra.mxu0 %v328
        %340 = vmatprep.subr.mxu0 %v327
        %341 = vmatpush1.msra.mxu0 %v326
        %342 = vmatprep.subr.mxu0 %v325
        %343 = vmatpush1.msra.mxu0 %v324
        %344 = vmatprep.subr.mxu0 %v323
        %345 = vmatpush1.msra.mxu0 %v322
        %346 = vmatprep.subr.mxu0 %v321
        %347 = vmatpush1.msra.mxu0 %v320
        %348 = vmatprep.subr.mxu0 %v319
        %349 = vmatpush1.msra.mxu0 %v318
        %350 = vmatprep.subr.mxu0 %v317
        %351 = vmatpush1.msra.mxu0 %v316
        %352 = vmatprep.subr.mxu0 %v315
        %353 = vmatpush1.msra.mxu0 %v314
        %354 = vmatprep.subr.mxu0 %v313
        %355 = vmatpush1.msra.mxu0 %v312
        %356 = vmatprep.subr.mxu0 %v311
        %357 = vmatpush1.msra.mxu0 %v310
        %358 = vmatprep.subr.mxu0 %v309
        %359 = vmatpush1.msra.mxu0 %v308
        %360 = vmatprep.subr.mxu0 %v307
        %361 = vmatpush1.msra.mxu0 %v306
        %362 = vmatprep.subr.mxu0 %v305
        %363 = vmatpush1.msra.mxu0 %v304
        %364 = vmatprep.subr.mxu0 %v303
        %365 = vmatpush1.msra.mxu0 %v302
        %366 = vmatprep.subr.mxu0 0.0
        %367 = vmatpush2.msra.mxu0 0.0
        %368 = vmatprep.subr.mxu0 0.0
        %369 = vmatpush2.msra.mxu0 0.0
        %370 = vmatprep.subr.mxu0 0.0
        %371 = vmatpush2.msra.mxu0 0.0
        %372 = vmatprep.subr.mxu0 0.0
        %373 = vmatpush2.msra.mxu0 0.0
        %374 = vmatprep.subr.mxu0 0.0
        %375 = vmatpush2.msra.mxu0 0.0
        %376 = vmatprep.subr.mxu0 0.0
        %377 = vmatpush2.msra.mxu0 0.0
        %378 = vmatprep.subr.mxu0 0.0
        %379 = vmatpush2.msra.mxu0 0.0
        %380 = vmatprep.subr.mxu0 0.0
        %381 = vmatpush2.msra.mxu0 0.0
        %382 = vmatprep.subr.mxu0 0.0
        %383 = vmatpush2.msra.mxu0 0.0
        %384 = vmatprep.subr.mxu0 0.0
        %385 = vmatpush2.msra.mxu0 0.0
        %386 = vmatprep.subr.mxu0 0.0
        %387 = vmatpush2.msra.mxu0 0.0
        %388 = vmatprep.subr.mxu0 0.0
        %389 = vmatpush2.msra.mxu0 0.0
        %390 = vmatprep.subr.mxu0 0.0
        %391 = vmatpush2.msra.mxu0 0.0
        %392 = vmatprep.subr.mxu0 0.0
        %393 = vmatpush2.msra.mxu0 0.0
        %394 = vmatprep.subr.mxu0 0.0
        %395 = vmatpush2.msra.mxu0 0.0
        %396 = vmatprep.subr.mxu0 0.0
        %397 = vmatpush2.msra.mxu0 0.0
        %398 = vmatprep.mubr.f32.mxu0 0.0
        %399 = vmatmul.mubr.f32.gmra.mxu0 %v294
        %v400 = vpop.f32.mrf.mxu0
        %v401 = vadd.f32 0.0, %v400
        %v402 = vpop.f32.mrf.mxu0
        %v403 = vadd.f32 0.0, %v402
        %404 = vmatprep.mubr.f32.mxu0 0.0
        %405 = vmatmul.mubr.f32.gmra.mxu0 %v295
        %v406 = vpop.f32.mrf.mxu0
        %v407 = vadd.f32 0.0, %v406
        %v408 = vpop.f32.mrf.mxu0
        %v409 = vadd.f32 0.0, %v408
        %410 = vmatprep.mubr.f32.mxu0 0.0
        %411 = vmatmul.mubr.f32.gmra.mxu0 %v296
        %v412 = vpop.f32.mrf.mxu0
        %v413 = vadd.f32 0.0, %v412
        %v414 = vpop.f32.mrf.mxu0
        %v415 = vadd.f32 0.0, %v414
        %416 = vmatprep.mubr.f32.mxu0 0.0
        %417 = vmatmul.mubr.f32.gmra.mxu0 %v297
        %v418 = vpop.f32.mrf.mxu0
        %v419 = vadd.f32 0.0, %v418
        %v420 = vpop.f32.mrf.mxu0
        %v421 = vadd.f32 0.0, %v420
        %422 = vmatprep.mubr.f32.mxu0 0.0
        %423 = vmatmul.mubr.f32.gmra.mxu0 %v298
        %v424 = vpop.f32.mrf.mxu0
        %v425 = vadd.f32 0.0, %v424
        %v426 = vpop.f32.mrf.mxu0
        %v427 = vadd.f32 0.0, %v426
        %428 = vmatprep.mubr.f32.mxu0 0.0
        %429 = vmatmul.mubr.f32.gmra.mxu0 %v299
        %v430 = vpop.f32.mrf.mxu0
        %v431 = vadd.f32 0.0, %v430
        %v432 = vpop.f32.mrf.mxu0
        %v433 = vadd.f32 0.0, %v432
        %434 = vmatprep.mubr.f32.mxu0 0.0
        %435 = vmatmul.mubr.f32.gmra.mxu0 %v300
        %v436 = vpop.f32.mrf.mxu0
        %v437 = vadd.f32 0.0, %v436
        %v438 = vpop.f32.mrf.mxu0
        %v439 = vadd.f32 0.0, %v438
        %440 = vmatprep.mubr.f32.mxu0 0.0
        %441 = vmatmul.mubr.f32.gmra.mxu0 %v301
        %v442 = vpop.f32.mrf.mxu0
        %v443 = vadd.f32 0.0, %v442
        %v444 = vpop.f32.mrf.mxu0
        %v445 = vadd.f32 0.0, %v444
        %446 = vdwg.mxu0
        %v447 = vxor.u32 %v401, 2147483648
        %v448 = vxor.u32 %v407, 2147483648
        %v449 = vxor.u32 %v413, 2147483648
        %v450 = vxor.u32 %v419, 2147483648
        %v451 = vxor.u32 %v425, 2147483648
        %v452 = vxor.u32 %v431, 2147483648
        %v453 = vxor.u32 %v437, 2147483648
        %v454 = vxor.u32 %v443, 2147483648
        %v455 = vmul.f32 %v447, 1.442695
        %v456 = vpow.pop %v455
        %v457 = vmul.f32 %v448, 1.442695
        %v458 = vpow.pop %v457
        %v459 = vmul.f32 %v449, 1.442695
        %v460 = vpow.pop %v459
        %v461 = vmul.f32 %v450, 1.442695
        %v462 = vpow.pop %v461
        %v463 = vmul.f32 %v451, 1.442695
        %v464 = vpow.pop %v463
        %v465 = vmul.f32 %v452, 1.442695
        %v466 = vpow.pop %v465
        %v467 = vmul.f32 %v453, 1.442695
        %v468 = vpow.pop %v467
        %v469 = vmul.f32 %v454, 1.442695
        %v470 = vpow.pop %v469
        %v471 = vadd.f32 %v456, 1.0
        %v472 = vadd.f32 %v458, 1.0
        %v473 = vadd.f32 %v460, 1.0
        %v474 = vadd.f32 %v462, 1.0
        %v475 = vadd.f32 %v464, 1.0
        %v476 = vadd.f32 %v466, 1.0
        %v477 = vadd.f32 %v468, 1.0
        %v478 = vadd.f32 %v470, 1.0
        %v479 = vrcp.pop %v471
        %v480 = vmul.f32 1.0, %v479
        %v481 = vrcp.pop %v472
        %v482 = vmul.f32 1.0, %v481
        %v483 = vrcp.pop %v473
        %v484 = vmul.f32 1.0, %v483
        %v485 = vrcp.pop %v474
        %v486 = vmul.f32 1.0, %v485
        %v487 = vrcp.pop %v475
        %v488 = vmul.f32 1.0, %v487
        %v489 = vrcp.pop %v476
        %v490 = vmul.f32 1.0, %v489
        %v491 = vrcp.pop %v477
        %v492 = vmul.f32 1.0, %v491
        %v493 = vrcp.pop %v478
        %v494 = vmul.f32 1.0, %v493
        %v495 = vmul.f32 %v401, %v480
        %v496 = vmul.f32 %v407, %v482
        %v497 = vmul.f32 %v413, %v484
        %v498 = vmul.f32 %v419, %v486
        %v499 = vmul.f32 %v425, %v488
        %v500 = vmul.f32 %v431, %v490
        %v501 = vmul.f32 %v437, %v492
        %v502 = vmul.f32 %v443, %v494
        %v503 = vmul.f32 %v495, %v403
        %v504 = vmul.f32 %v496, %v409
        %v505 = vmul.f32 %v497, %v415
        %v506 = vmul.f32 %v498, %v421
        %v507 = vmul.f32 %v499, %v427
        %v508 = vmul.f32 %v500, %v433
        %v509 = vmul.f32 %v501, %v439
        %v510 = vmul.f32 %v502, %v445
        %v511 = vld [vmem:[#allocation2] sm:$0xff]
        %v512 = vld [vmem:[#allocation2 + $0x8] sm:$0xff]
        %v513 = vld [vmem:[#allocation2 + $0x10] sm:$0xff]
        %v514 = vld [vmem:[#allocation2 + $0x18] sm:$0xff]
        %v515 = vld [vmem:[#allocation2 + $0x20] sm:$0xff]
        %v516 = vld [vmem:[#allocation2 + $0x28] sm:$0xff]
        %v517 = vld [vmem:[#allocation2 + $0x30] sm:$0xff]
        %v518 = vld [vmem:[#allocation2 + $0x38] sm:$0xff]
        %v519 = vld [vmem:[%s245] sm:$0xff]
        %v520 = vld [vmem:[%s245 + $0x8] sm:$0xff]
        %v521 = vld [vmem:[%s245 + $0x10] sm:$0xff]
        %v522 = vld [vmem:[%s245 + $0x18] sm:$0xff]
        %v523 = vld [vmem:[%s245 + $0x20] sm:$0xff]
        %v524 = vld [vmem:[%s245 + $0x28] sm:$0xff]
        %v525 = vld [vmem:[%s245 + $0x30] sm:$0xff]
        %v526 = vld [vmem:[%s245 + $0x38] sm:$0xff]
        %v527 = vld [vmem:[%s245 + $0x40] sm:$0xff]
        %v528 = vld [vmem:[%s245 + $0x48] sm:$0xff]
        %v529 = vld [vmem:[%s245 + $0x50] sm:$0xff]
        %v530 = vld [vmem:[%s245 + $0x58] sm:$0xff]
        %v531 = vld [vmem:[%s245 + $0x60] sm:$0xff]
        %v532 = vld [vmem:[%s245 + $0x68] sm:$0xff]
        %v533 = vld [vmem:[%s245 + $0x70] sm:$0xff]
        %v534 = vld [vmem:[%s245 + $0x78] sm:$0xff]
        %535 = vmatprep.subr.mxu0 0.0
        %536 = vmatpush1.msra.mxu0 %v534
        %537 = vmatprep.subr.mxu0 0.0
        %538 = vmatpush1.msra.mxu0 %v533
        %539 = vmatprep.subr.mxu0 0.0
        %540 = vmatpush1.msra.mxu0 %v532
        %541 = vmatprep.subr.mxu0 0.0
        %542 = vmatpush1.msra.mxu0 %v531
        %543 = vmatprep.subr.mxu0 0.0
        %544 = vmatpush1.msra.mxu0 %v530
        %545 = vmatprep.subr.mxu0 0.0
        %546 = vmatpush1.msra.mxu0 %v529
        %547 = vmatprep.subr.mxu0 0.0
        %548 = vmatpush1.msra.mxu0 %v528
        %549 = vmatprep.subr.mxu0 0.0
        %550 = vmatpush1.msra.mxu0 %v527
        %551 = vmatprep.subr.mxu0 0.0
        %552 = vmatpush1.msra.mxu0 %v526
        %553 = vmatprep.subr.mxu0 0.0
        %554 = vmatpush1.msra.mxu0 %v525
        %555 = vmatprep.subr.mxu0 0.0
        %556 = vmatpush1.msra.mxu0 %v524
        %557 = vmatprep.subr.mxu0 0.0
        %558 = vmatpush1.msra.mxu0 %v523
        %559 = vmatprep.subr.mxu0 0.0
        %560 = vmatpush1.msra.mxu0 %v522
        %561 = vmatprep.subr.mxu0 0.0
        %562 = vmatpush1.msra.mxu0 %v521
        %563 = vmatprep.subr.mxu0 0.0
        %564 = vmatpush1.msra.mxu0 %v520
        %565 = vmatprep.subr.mxu0 0.0
        %566 = vmatpush1.msra.mxu0 %v519
        %567 = vmatprep.subr.mxu0 0.0
        %568 = vmatpush2.msra.mxu0 0.0
        %569 = vmatprep.subr.mxu0 0.0
        %570 = vmatpush2.msra.mxu0 0.0
        %571 = vmatprep.subr.mxu0 0.0
        %572 = vmatpush2.msra.mxu0 0.0
        %573 = vmatprep.subr.mxu0 0.0
        %574 = vmatpush2.msra.mxu0 0.0
        %575 = vmatprep.subr.mxu0 0.0
        %576 = vmatpush2.msra.mxu0 0.0
        %577 = vmatprep.subr.mxu0 0.0
        %578 = vmatpush2.msra.mxu0 0.0
        %579 = vmatprep.subr.mxu0 0.0
        %580 = vmatpush2.msra.mxu0 0.0
        %581 = vmatprep.subr.mxu0 0.0
        %582 = vmatpush2.msra.mxu0 0.0
        %583 = vmatprep.subr.mxu0 0.0
        %584 = vmatpush2.msra.mxu0 0.0
        %585 = vmatprep.subr.mxu0 0.0
        %586 = vmatpush2.msra.mxu0 0.0
        %587 = vmatprep.subr.mxu0 0.0
        %588 = vmatpush2.msra.mxu0 0.0
        %589 = vmatprep.subr.mxu0 0.0
        %590 = vmatpush2.msra.mxu0 0.0
        %591 = vmatprep.subr.mxu0 0.0
        %592 = vmatpush2.msra.mxu0 0.0
        %593 = vmatprep.subr.mxu0 0.0
        %594 = vmatpush2.msra.mxu0 0.0
        %595 = vmatprep.subr.mxu0 0.0
        %596 = vmatpush2.msra.mxu0 0.0
        %597 = vmatprep.subr.mxu0 0.0
        %598 = vmatpush2.msra.mxu0 0.0
        %599 = vmatprep.mubr.f32.mxu0 0.0
        %600 = vmatmul.mubr.f32.gmra.mxu0 %v503
        %v601 = vpop.f32.mrf.mxu0
        %v602 = vadd.f32 0.0, %v601
        %v603 = vpop.f32.mrf.mxu0
        %604 = vmatprep.mubr.f32.mxu0 0.0
        %605 = vmatmul.mubr.f32.gmra.mxu0 %v504
        %v606 = vpop.f32.mrf.mxu0
        %v607 = vadd.f32 0.0, %v606
        %v608 = vpop.f32.mrf.mxu0
        %609 = vmatprep.mubr.f32.mxu0 0.0
        %610 = vmatmul.mubr.f32.gmra.mxu0 %v505
        %v611 = vpop.f32.mrf.mxu0
        %v612 = vadd.f32 0.0, %v611
        %v613 = vpop.f32.mrf.mxu0
        %614 = vmatprep.mubr.f32.mxu0 0.0
        %615 = vmatmul.mubr.f32.gmra.mxu0 %v506
        %v616 = vpop.f32.mrf.mxu0
        %v617 = vadd.f32 0.0, %v616
        %v618 = vpop.f32.mrf.mxu0
        %619 = vmatprep.mubr.f32.mxu0 0.0
        %620 = vmatmul.mubr.f32.gmra.mxu0 %v507
        %v621 = vpop.f32.mrf.mxu0
        %v622 = vadd.f32 0.0, %v621
        %v623 = vpop.f32.mrf.mxu0
        %624 = vmatprep.mubr.f32.mxu0 0.0
        %625 = vmatmul.mubr.f32.gmra.mxu0 %v508
        %v626 = vpop.f32.mrf.mxu0
        %v627 = vadd.f32 0.0, %v626
        %v628 = vpop.f32.mrf.mxu0
        %629 = vmatprep.mubr.f32.mxu0 0.0
        %630 = vmatmul.mubr.f32.gmra.mxu0 %v509
        %v631 = vpop.f32.mrf.mxu0
        %v632 = vadd.f32 0.0, %v631
        %v633 = vpop.f32.mrf.mxu0
        %634 = vmatprep.mubr.f32.mxu0 0.0
        %635 = vmatmul.mubr.f32.gmra.mxu0 %v510
        %v636 = vpop.f32.mrf.mxu0
        %v637 = vadd.f32 0.0, %v636
        %v638 = vpop.f32.mrf.mxu0
        %639 = vdwg.mxu0
        %v640 = vadd.f32 %v511, %v602
        %v641 = vadd.f32 %v512, %v607
        %v642 = vadd.f32 %v513, %v612
        %v643 = vadd.f32 %v514, %v617
        %v644 = vadd.f32 %v515, %v622
        %v645 = vadd.f32 %v516, %v627
        %v646 = vadd.f32 %v517, %v632
        %v647 = vadd.f32 %v518, %v637
        %648 = vst [vmem:[#allocation2] sm:$0xff] %v640
        %649 = vst [vmem:[#allocation2 + $0x8] sm:$0xff] %v641
        %650 = vst [vmem:[#allocation2 + $0x10] sm:$0xff] %v642
        %651 = vst [vmem:[#allocation2 + $0x18] sm:$0xff] %v643
        %652 = vst [vmem:[#allocation2 + $0x20] sm:$0xff] %v644
        %653 = vst [vmem:[#allocation2 + $0x28] sm:$0xff] %v645
        %654 = vst [vmem:[#allocation2 + $0x30] sm:$0xff] %v646
        %655 = vst [vmem:[#allocation2 + $0x38] sm:$0xff] %v647
        %p656 = scmp.eq.s32.totalorder %s28, 3
        // Predicated region
        $region49: #{tpu_custom_call.1} parent=31 // pred_check
          %p657 = pneg %p656
        $region50: #{tpu_custom_call.1} parent=31 // pred_check_branch
          %659 = sbr.rel (%p657) target = $region52
        $region51: #{tpu_custom_call.1} parent=31 // pred_region
          %v660 = vld [vmem:[#allocation2] sm:$0xff]
          %v661 = vld [vmem:[#allocation2 + $0x8] sm:$0xff]
          %v662 = vld [vmem:[#allocation2 + $0x10] sm:$0xff]
          %v663 = vld [vmem:[#allocation2 + $0x18] sm:$0xff]
          %v664 = vld [vmem:[#allocation2 + $0x20] sm:$0xff]
          %v665 = vld [vmem:[#allocation2 + $0x28] sm:$0xff]
          %v666 = vld [vmem:[#allocation2 + $0x30] sm:$0xff]
          %v667 = vld [vmem:[#allocation2 + $0x38] sm:$0xff]
          %668 = vst [vmem:[%s277] sm:$0xff] %v660
          %669 = vst [vmem:[%s277 + $0x8] sm:$0xff] %v661
          %670 = vst [vmem:[%s277 + $0x10] sm:$0xff] %v662
          %671 = vst [vmem:[%s277 + $0x18] sm:$0xff] %v663
          %672 = vst [vmem:[%s277 + $0x20] sm:$0xff] %v664
          %673 = vst [vmem:[%s277 + $0x28] sm:$0xff] %v665
          %674 = vst [vmem:[%s277 + $0x30] sm:$0xff] %v666
          %675 = vst [vmem:[%s277 + $0x38] sm:$0xff] %v667
        $region52: #{tpu_custom_call.1} parent=31 // pred_fallthru
          _
        %s676 = sand.u32 %s121, 1
        %s677 = scalar_lea.sflag [#allocation5], %s676
        %s678 = sand.u32 %s121, 1
        %s679 = smul.addr %s678, 64
        %s680 = scalar_lea.vmem [#allocation9], %s679
        // Predicated region
        $region53: #{tpu_custom_call.1} parent=31 // pred_check
          %p681 = pneg %p131
        $region54: #{tpu_custom_call.1} parent=31 // pred_check_branch
          %683 = sbr.rel (%p681) target = $region56
        $region55: #{tpu_custom_call.1} parent=31 // pred_region
          %s684 = smul.u32 8, %s27
          %s686 = ssub.s32 1024, 1024
          %687 = vsyncadd %s677, %s686
          %s688 = smul.addr %s684, 128
          %s689 = scalar_lea.hbm %s3, %s688
          %s690 = sshll.u32 %s680, 4
          %s691 = int_to_ptr.vmem [resolvable:$true] %s690
          %696 = dma.vmem_to_hbm [thread:$0]  %s691, 1024, %s689, %s677, 128, 128, 8
        $region56: #{tpu_custom_call.1} parent=31 // pred_fallthru
          _
      $region32: #{tpu_custom_call.1} parent=5 // pred_fallthru
        _
      %p697 = scmp.le.s32.totalorder 2, %s18
      // Predicated region
      $region57: #{tpu_custom_call.1} parent=5 // pred_check
        %p698 = pneg %p697
      $region58: #{tpu_custom_call.1} parent=5 // pred_check_branch
        %700 = sbr.rel (%p698) target = $region60
      $region59: #{tpu_custom_call.1} parent=5 // pred_region
        %s701 = ssub.s32 %s18, 2
        // Predicated region
        $region61: #{tpu_custom_call.1} parent=59 // pred_check
          %p702 = pneg %p137
        $region62: #{tpu_custom_call.1} parent=59 // pred_check_branch
          %704 = sbr.rel (%p702) target = $region64
        $region63: #{tpu_custom_call.1} parent=59 // pred_region
          %s705 = sand.u32 %s122, 1
          %s706 = scalar_lea.sflag [#allocation5], %s705
          %s707 = sand.u32 %s122, 1
          %s708 = smul.addr %s707, 64
          %s709 = scalar_lea.vmem [#allocation9], %s708
          %710 = dma.done %s706, 1024
        $region64: #{tpu_custom_call.1} parent=59 // pred_fallthru
          _
      $region60: #{tpu_custom_call.1} parent=5 // pred_fallthru
        _
    $region6: #{tpu_custom_call.1} parent=1 // loop_footer
      %s22 = sadd.s32 1, %s18
    $region7: #{tpu_custom_call.1} parent=1 // loop_footer_branch
      %17 = sbr.rel target = $region3
    $region8: #{tpu_custom_call.1} parent=1 // loop_exit
      _
    %711 = vsyncpa [#allocation4], 1
    %s712 = scalar_lea.sflag [#allocation4], 1
    %713 = vsyncpa %s712, 1
    %714 = vsyncpa [#allocation7], 1
    %s715 = scalar_lea.sflag [#allocation7], 1
    %716 = vsyncpa %s715, 1
    %717 = vsyncpa [#allocation5], 1
    %s718 = scalar_lea.sflag [#allocation5], 1
    %719 = vsyncpa %s718, 1

</llo_original>
